<compile_context>
chip_gen: v5e
topology: v5e:2x2
jax: 0.10.0
libtpu: 0.0.40
codegen_flags: <defaults>
</compile_context>

<pallas_src>
import jax
import jax.numpy as jnp
from jax.experimental import pallas as pl
from jax.experimental.pallas import tpu as pltpu

HIDDEN_SIZE = 32
RECURRENCE_SIZE = 8
MAP_CHANNELS = 1
T_CROP, B_CROP, L_CROP, R_CROP = 26, 38, 26, 38
CROP_H, CROP_W = 12, 12
OUT_SIZE = 7
MAP_FEAT = CROP_H * CROP_W * MAP_CHANNELS            # 144
IN_DIM = MAP_FEAT + RECURRENCE_SIZE                  # 152 (full MLP fan-in)

DEFAULT_TB = 4096  # batch-tile rows (multiple of 16); bf16 x double-buffered ~2.3 MiB


def _round_up(x, m):
    return (x + m - 1) // m * m


def _cdiv(a, b):
    return -(-a // b)


def _mlp_action_kernel(x_ref, w1_ref, b1_ref, w2_ref, b2_ref, o_ref):
    """Fused DenseMlpBlock2 + sigmoid-on-column-3 over one [TB, 144] batch tile."""
    x = x_ref[...]                                                   # [TB, 144] bf16
    h = jnp.dot(x, w1_ref[...], preferred_element_type=jnp.float32)  # f32 accumulate
    h = h + b1_ref[...]                                              # [TB, 32] f32
    h = jnp.maximum(h, 0.01 * h)                                     # LeakyReLU(0.01)
    y = jnp.dot(h.astype(jnp.bfloat16), w2_ref[...],
                preferred_element_type=jnp.float32)
    y = y + b2_ref[...]                                              # [TB, 7] f32
    # actions_pred[:, 3] = sigmoid(actions_pred[:, 3]); keep the column mask a
    # (1, OUT_SIZE) row so no [TB, 7] iota is regenerated every grid step.
    col = jax.lax.broadcasted_iota(jnp.int32, (1, OUT_SIZE), 1)
    y = jnp.where(col == 3, jax.nn.sigmoid(y), y)
    o_ref[...] = y.astype(o_ref.dtype)


def init_params(key):
    """Deterministic PyTorch-style (uniform +-1/sqrt(fan_in)) parameter init."""
    k1, k2, k3, k4 = jax.random.split(key, 4)
    lim1 = 1.0 / jnp.sqrt(jnp.float32(IN_DIM))
    lim2 = 1.0 / jnp.sqrt(jnp.float32(HIDDEN_SIZE))
    w1 = jax.random.uniform(k1, (IN_DIM, HIDDEN_SIZE), jnp.float32, -lim1, lim1)
    b1 = jax.random.uniform(k2, (1, HIDDEN_SIZE), jnp.float32, -lim1, lim1)
    w2 = jax.random.uniform(k3, (HIDDEN_SIZE, OUT_SIZE), jnp.float32, -lim2, lim2)
    b2 = jax.random.uniform(k4, (1, OUT_SIZE), jnp.float32, -lim2, lim2)
    # NOTE: the module also holds an nn.LSTMCell(4, 8); it is never used when
    # use_recurrence=False (forward() raises otherwise), so no params here.
    return (w1, b1, w2, b2)


def cropped_map_to_action_triplet(maps_r, params, *, tb=DEFAULT_TB):
    """Forward pass.  maps_r: NCHW float array [B, C, H, W] with H, W >= 38."""
    w1, b1, w2, b2 = params
    B = maps_r.shape[0]

    # Channel select + hard-coded spatial crop + flatten + bf16 cast (cheap
    # glue; XLA may fuse this producer directly into the kernel's input DMA,
    # see allow_input_fusion below, so the DMA carries half the bytes).
    maps_s = maps_r[:, :MAP_CHANNELS, T_CROP:B_CROP, L_CROP:R_CROP]   # [B,1,12,12]
    x = maps_s.reshape(B, MAP_FEAT).astype(jnp.bfloat16)              # [B,144] bf16
    # The RECURRENCE_SIZE zero "hist_features" columns contribute exactly
    # 0 @ w1[144:], so drop the concat and feed only the first 144 rows of w1:
    # identical math, 8 fewer dead K rows, no [B,152] HBM buffer.
    w1_map = w1[:MAP_FEAT].astype(jnp.bfloat16)                       # [144,32] bf16
    w2_b = w2.astype(jnp.bfloat16)                                    # [32,7]  bf16
    # TODO(synk): nn.Dropout(0.5) is treated as identity (eval/inference mode).

    # Batch tiling: TB rows per grid step (multiple of 16 for bf16 sublane
    # packing); pad batch to a whole number of tiles (padded zero rows are
    # computed harmlessly and sliced off).
    b_ceil = _round_up(B, 16)
    tb = max(16, min(_round_up(tb, 16), b_ceil))
    # Guarantee >=2 grid tiles when the batch allows so the "parallel" grid
    # axis can shard across v7x's two TensorCores (no-op on v5e/v6e).
    if b_ceil >= 32:
        tb = min(tb, _round_up(_cdiv(b_ceil, 2), 16))
    b_pad = _round_up(B, tb)
    if b_pad != B:
        x = jnp.pad(x, ((0, b_pad - B), (0, 0)))

    out = pl.pallas_call(
        _mlp_action_kernel,
        out_shape=jax.ShapeDtypeStruct((b_pad, OUT_SIZE), jnp.float32),
        grid=(b_pad // tb,),
        in_specs=[
            pl.BlockSpec((tb, MAP_FEAT), lambda i: (i, 0)),           # x: batch-tiled
            pl.BlockSpec((MAP_FEAT, HIDDEN_SIZE), lambda i: (0, 0)),  # weights resident
            pl.BlockSpec((1, HIDDEN_SIZE), lambda i: (0, 0)),
            pl.BlockSpec((HIDDEN_SIZE, OUT_SIZE), lambda i: (0, 0)),
            pl.BlockSpec((1, OUT_SIZE), lambda i: (0, 0)),
        ],
        out_specs=pl.BlockSpec((tb, OUT_SIZE), lambda i: (i, 0)),
        compiler_params=pltpu.CompilerParams(
            # batch tiles are independent -> megacore-shardable on v7x
            dimension_semantics=("parallel",),
            # allow the crop/reshape/cast/pad producer of x to fuse into the
            # kernel input instead of materializing x in HBM.
            allow_input_fusion=[True, False, False, False, False],
        ),
    )(x, w1_map, b1, w2_b, b2)
    return out[:B] if b_pad != B else out


def _reference(maps_r, params):
    """Pure-JAX f32 reference for a sanity check (mirrors the PyTorch module)."""
    w1, b1, w2, b2 = params
    B = maps_r.shape[0]
    maps_s = maps_r[:, :MAP_CHANNELS, T_CROP:B_CROP, L_CROP:R_CROP]
    x = jnp.concatenate(
        [maps_s.reshape(B, -1).astype(jnp.float32),
         jnp.zeros((B, RECURRENCE_SIZE), jnp.float32)], axis=1)
    h = x @ w1 + b1
    h = jnp.where(h > 0, h, 0.01 * h)
    y = h @ w2 + b2
    return y.at[:, 3].set(jax.nn.sigmoid(y[:, 3]))


if __name__ == "__main__":
    key = jax.random.PRNGKey(0)
    k_map, k_par = jax.random.split(key)

    # Small deterministic input: batch=2, 4 channels (module keeps only the
    # first map_channels=1), spatial 64x64 so the hardcoded 26:38 crop is valid.
    maps_r = jax.random.normal(k_map, (2, 4, 64, 64), jnp.float32)
    params = init_params(k_par)

    fwd = jax.jit(cropped_map_to_action_triplet)
    actions_pred = jax.block_until_ready(fwd(maps_r, params))

    ref = _reference(maps_r, params)
    assert actions_pred.shape == (2, 7)
    # bf16 GEMM inputs with f32 accumulation: loosened tolerance vs f32 ref.
    assert jnp.allclose(actions_pred, ref, atol=2e-2, rtol=2e-2)
    print("KERNEL_OK")
</pallas_src>

<mosaic_0001>
module attributes {stable_mosaic.version = 11 : i64} {
  func.func @_mlp_action_kernel(%arg0: i32, %arg1: memref<16x144xbf16, #tpu.memory_space<vmem>>, %arg2: memref<144x32xbf16, #tpu.memory_space<vmem>>, %arg3: memref<1x32xf32, #tpu.memory_space<vmem>>, %arg4: memref<32x7xbf16, #tpu.memory_space<vmem>>, %arg5: memref<1x7xf32, #tpu.memory_space<vmem>>, %arg6: memref<16x7xf32, #tpu.memory_space<vmem>>) attributes {dimension_semantics = [#tpu.dimension_semantics<parallel>], iteration_bounds = array<i64: 1>, scalar_prefetch = 0 : i64, scratch_operands = 0 : i64, tpu.core_type = #tpu.core_type<tc>, window_params = [{transform_indices = @transform_0, window_bounds = array<i64: 16, 144>}, {pipeline_mode = #tpu.pipeline_mode<synchronous>, transform_indices = @transform_1, window_bounds = array<i64: 144, 32>}, {pipeline_mode = #tpu.pipeline_mode<synchronous>, transform_indices = @transform_2, window_bounds = array<i64: 1, 32>}, {pipeline_mode = #tpu.pipeline_mode<synchronous>, transform_indices = @transform_3, window_bounds = array<i64: 32, 7>}, {pipeline_mode = #tpu.pipeline_mode<synchronous>, transform_indices = @transform_4, window_bounds = array<i64: 1, 7>}, {transform_indices = @transform_5, window_bounds = array<i64: 16, 7>}]} {
    %c0 = arith.constant 0 : index
    %c0_0 = arith.constant 0 : index
    %0 = vector.load %arg1[%c0, %c0_0] : memref<16x144xbf16, #tpu.memory_space<vmem>>, vector<16x144xbf16>
    %c0_1 = arith.constant 0 : index
    %c0_2 = arith.constant 0 : index
    %1 = vector.load %arg2[%c0_1, %c0_2] : memref<144x32xbf16, #tpu.memory_space<vmem>>, vector<144x32xbf16>
    %cst = arith.constant dense<0.000000e+00> : vector<16x32xf32>
    %2 = tpu.matmul %0, %1, %cst {dimension_numbers = #tpu.dot_dimension_numbers<[1], [0], [0], [1], [0, 0, 1, 1], [], []>} : vector<16x144xbf16>, vector<144x32xbf16>, vector<16x32xf32> -> vector<16x32xf32>
    %c0_3 = arith.constant 0 : index
    %c0_4 = arith.constant 0 : index
    %3 = vector.load %arg3[%c0_3, %c0_4] : memref<1x32xf32, #tpu.memory_space<vmem>>, vector<1x32xf32>
    %4 = vector.broadcast %3 : vector<1x32xf32> to vector<16x32xf32>
    %5 = arith.addf %2, %4 : vector<16x32xf32>
    %cst_5 = arith.constant 0.00999999977 : f32
    %6 = vector.broadcast %cst_5 : f32 to vector<16x32xf32>
    %7 = arith.mulf %6, %5 : vector<16x32xf32>
    %8 = arith.maximumf %5, %7 : vector<16x32xf32>
    %9 = arith.truncf %8 : vector<16x32xf32> to vector<16x32xbf16>
    %c0_6 = arith.constant 0 : index
    %c0_7 = arith.constant 0 : index
    %10 = vector.load %arg4[%c0_6, %c0_7] : memref<32x7xbf16, #tpu.memory_space<vmem>>, vector<32x7xbf16>
    %cst_8 = arith.constant dense<0.000000e+00> : vector<16x7xf32>
    %11 = tpu.matmul %9, %10, %cst_8 {dimension_numbers = #tpu.dot_dimension_numbers<[1], [0], [0], [1], [0, 0, 1, 1], [], []>} : vector<16x32xbf16>, vector<32x7xbf16>, vector<16x7xf32> -> vector<16x7xf32>
    %c0_9 = arith.constant 0 : index
    %c0_10 = arith.constant 0 : index
    %12 = vector.load %arg5[%c0_9, %c0_10] : memref<1x7xf32, #tpu.memory_space<vmem>>, vector<1x7xf32>
    %13 = vector.broadcast %12 : vector<1x7xf32> to vector<16x7xf32>
    %14 = arith.addf %11, %13 : vector<16x7xf32>
    %15 = tpu.iota {dimensions = array<i32: 1>} : vector<1x7xi32>
    %c3_i32 = arith.constant 3 : i32
    %16 = vector.broadcast %c3_i32 : i32 to vector<1x7xi32>
    %17 = arith.cmpi eq, %15, %16 : vector<1x7xi32>
    %18 = arith.negf %14 : vector<16x7xf32>
    %19 = math.exp %18 : vector<16x7xf32>
    %cst_11 = arith.constant 1.000000e+00 : f32
    %20 = vector.broadcast %cst_11 : f32 to vector<16x7xf32>
    %21 = arith.addf %20, %19 : vector<16x7xf32>
    %22 = arith.divf %20, %21 : vector<16x7xf32>
    %23 = vector.shape_cast %17 : vector<1x7xi1> to vector<1x7xi1>
    %24 = vector.broadcast %23 : vector<1x7xi1> to vector<16x7xi1>
    %25 = arith.select %24, %22, %14 : vector<16x7xi1>, vector<16x7xf32>
    %c0_12 = arith.constant 0 : index
    %c0_13 = arith.constant 0 : index
    %26 = vector.load %arg6[%c0_12, %c0_13] : memref<16x7xf32, #tpu.memory_space<vmem>>, vector<16x7xf32>
    tpu.vector_store %arg6[%c0_12, %c0_13], %25 {strides = array<i32>} : memref<16x7xf32, #tpu.memory_space<vmem>>, vector<16x7xf32>,
    return
  }
  func.func @transform_0(%arg0: i32) -> (i32, i32) {
    %c0_i32 = arith.constant 0 : i32
    %c0_i32_0 = arith.constant 0 : i32
    return %arg0, %c0_i32 : i32, i32
  }
  func.func @transform_1(%arg0: i32) -> (i32, i32) {
    %c0_i32 = arith.constant 0 : i32
    %c0_i32_0 = arith.constant 0 : i32
    %c0_i32_1 = arith.constant 0 : i32
    return %c0_i32, %c0_i32_0 : i32, i32
  }
  func.func @transform_2(%arg0: i32) -> (i32, i32) {
    %c0_i32 = arith.constant 0 : i32
    %c0_i32_0 = arith.constant 0 : i32
    %c0_i32_1 = arith.constant 0 : i32
    return %c0_i32, %c0_i32_0 : i32, i32
  }
  func.func @transform_3(%arg0: i32) -> (i32, i32) {
    %c0_i32 = arith.constant 0 : i32
    %c0_i32_0 = arith.constant 0 : i32
    %c0_i32_1 = arith.constant 0 : i32
    return %c0_i32, %c0_i32_0 : i32, i32
  }
  func.func @transform_4(%arg0: i32) -> (i32, i32) {
    %c0_i32 = arith.constant 0 : i32
    %c0_i32_0 = arith.constant 0 : i32
    %c0_i32_1 = arith.constant 0 : i32
    return %c0_i32, %c0_i32_0 : i32, i32
  }
  func.func @transform_5(%arg0: i32) -> (i32, i32) {
    %c0_i32 = arith.constant 0 : i32
    %c0_i32_0 = arith.constant 0 : i32
    return %arg0, %c0_i32 : i32, i32
  }
}

</mosaic_0001>

<llo_original>
// kernel: cropped_map_to_action_triplet.2
$region0: #{cropped_map_to_action_triplet.2}
  #allocation0 [shape = 'u32[]', space=smem, size = 0x4, offset = 0x4, fixed_abs, tag = 'smem constant byte address 0x4 - core index']
  #allocation1 [shape = 'u32[72,128]{1,0:T(1,128)}', space=vmem, size = 0x9000, scoped, tag = 'internal scratch']
  #allocation2 [shape = 'u32[2048]{0}', space=vmem, size = 0x2000, scoped, tag = 'scoped memory for cropped_map_to_action_triplet.2']
  #allocation3 [shape = 'u32[2048]{0}', space=vmem, size = 0x2000, scoped, tag = 'scoped memory for cropped_map_to_action_triplet.2']
  #allocation4 [shape = 'u32[2048]{0}', space=vmem, size = 0x2000, scoped, tag = 'scoped memory for cropped_map_to_action_triplet.2']
  #allocation5 [shape = 'u32[2048]{0}', space=vmem, size = 0x2000, scoped, tag = 'scoped memory for cropped_map_to_action_triplet.2']
  #allocation6 [shape = 'u32[2048]{0}', space=vmem, size = 0x2000, scoped, tag = 'scoped memory for cropped_map_to_action_triplet.2']
  %s0 = inlined_call_operand.vmem [shape: bf16[144,32], index: 0, kind: input, shape index: {}]
  %s1 = inlined_call_operand.vmem [shape: f32[1,32], index: 1, kind: input, shape index: {}]
  %s2 = inlined_call_operand.vmem [shape: bf16[32,7], index: 2, kind: input, shape index: {}]
  %s3 = inlined_call_operand.vmem [shape: f32[1,7], index: 3, kind: input, shape index: {}]
  %s4 = inlined_call_operand.vmem [shape: bf16[2,144], index: 4, kind: input, shape index: {}]
  %s5 = inlined_call_operand.<no memory space> [shape: bf16[], index: 5, kind: input, shape index: {}]
  %s6 = inlined_call_operand.vmem [shape: f32[16,7], index: 6, kind: output, shape index: {}]
  %s7 = sld [smem:[#allocation0]]
  $region30: #{cropped_map_to_action_triplet.2} parent=0
    _
  %s9 = ssub.s32 1, %s7
  %s10 = scalar_select 0, %s9, %s7
  %v11 = vstv %s5
  %v12 = vunpack.i.l.bf16 %v11
  %v14 = vunpack.i.h.bf16 %v11
  $region1: #{cropped_map_to_action_triplet.2} parent=0
    #allocation7 [shape = 'u8[8192]{0}', space=vmem, size = 0x2000, dematerialized = true, scoped, tag = 'FusionAdapter Buffer %fusion.1 = bf16[16,144]{1,0:T(8,128)(2,1)} fusion(%param_4.1, %param_5), kind=kLoop, calls=%fused_computation.3.clone, metadata={op_name="jit(cropped_map_to_action_triplet)/jit(_pad)/pad" stack_frame_id=11}']
    // Predicated region
    $region2: #{cropped_map_to_action_triplet.2} parent=1 // pred_check
      _
    $region3: #{cropped_map_to_action_triplet.2} parent=1 // pred_check_branch
      %17 = sbr.rel (0) target = $region5
    $region4: #{cropped_map_to_action_triplet.2} parent=1 // pred_region
      _
    $region5: #{cropped_map_to_action_triplet.2} parent=1 // pred_fallthru
      _
    // Predicated region
    $region6: #{cropped_map_to_action_triplet.2} parent=1 // pred_check
      _
    $region7: #{cropped_map_to_action_triplet.2} parent=1 // pred_check_branch
      %19 = sbr.rel (0) target = $region9
    $region8: #{cropped_map_to_action_triplet.2} parent=1 // pred_region
      _
    $region9: #{cropped_map_to_action_triplet.2} parent=1 // pred_fallthru
      _
    // Predicated region
    $region10: #{cropped_map_to_action_triplet.2} parent=1 // pred_check
      _
    $region11: #{cropped_map_to_action_triplet.2} parent=1 // pred_check_branch
      %21 = sbr.rel (0) target = $region13
    $region12: #{cropped_map_to_action_triplet.2} parent=1 // pred_region
      _
    $region13: #{cropped_map_to_action_triplet.2} parent=1 // pred_fallthru
      _
    // Predicated region
    $region14: #{cropped_map_to_action_triplet.2} parent=1 // pred_check
      _
    $region15: #{cropped_map_to_action_triplet.2} parent=1 // pred_check_branch
      %23 = sbr.rel (0) target = $region17
    $region16: #{cropped_map_to_action_triplet.2} parent=1 // pred_region
      _
    $region17: #{cropped_map_to_action_triplet.2} parent=1 // pred_fallthru
      _
    // Predicated region
    $region18: #{cropped_map_to_action_triplet.2} parent=1 // pred_check
      _
    $region19: #{cropped_map_to_action_triplet.2} parent=1 // pred_check_branch
      %25 = sbr.rel (0) target = $region21
    $region20: #{cropped_map_to_action_triplet.2} parent=1 // pred_region
      _
    $region21: #{cropped_map_to_action_triplet.2} parent=1 // pred_fallthru
      _
    %s27 = sor.u32 3, 1
    %s28 = sand.u32 %s27, 1
    %v29 = vld [vmem:[%s4] sm:%s28]
    %v30 = vunpack.c.l.bf16 %v29
    %v31 = vunpack.c.h.bf16 %v29
    %v32 = vlaneseq
    %v33 = vshrl.u32 %v32, 7
    %vm35 = vcmp.lt.s32.totalorder %v33, 2
    %v36 = vsel %vm35, %v30, %v12
    %v37 = vlaneseq
    %v38 = vand.u32 %v37, 127
    %vm40 = vcmp.lt.s32.totalorder %v38, 144
    %v41 = vsel %vm40, %v36, %v12
    %v42 = vpack.c.bf16 0.0, %v41
    %s44 = ssub.s32 16, 1
    %45 = vst [vmem:[#allocation7] sm:%s44] %v42
    %s46 = scalar_lea.vmem %s4, 1
    %s48 = sor.u32 3, 1
    %s49 = sand.u32 %s48, 1
    %v50 = vld [vmem:[%s46] sm:%s49]
    %v51 = vunpack.c.l.bf16 %v50
    %v52 = vunpack.c.h.bf16 %v50
    %v53 = vlaneseq
    %v54 = vshrl.u32 %v53, 7
    %vm56 = vcmp.lt.s32.totalorder %v54, 2
    %v57 = vsel %vm56, %v51, %v12
    %v58 = vlaneseq
    %v59 = vand.u32 %v58, 127
    %v60 = vadd.s32 %v59, 128
    %vm61 = vcmp.lt.s32.totalorder %v60, 144
    %v62 = vsel %vm61, %v57, %v12
    %s63 = scalar_lea.vmem [#allocation7], 4
    %v64 = vpack.c.bf16 0.0, %v62
    %s66 = ssub.s32 16, 1
    %67 = vst [vmem:[%s63] sm:%s66] %v64
    %s68 = scalar_lea.vmem [#allocation7], 8
    %v69 = vpack.c.bf16 0.0, %v12
    %s71 = ssub.s32 16, 1
    %72 = vst [vmem:[%s68] sm:%s71] %v69
    %s73 = scalar_lea.vmem [#allocation7], 12
    %v74 = vpack.c.bf16 0.0, %v12
    %s76 = ssub.s32 16, 1
    %77 = vst [vmem:[%s73] sm:%s76] %v74
    %v79 = vld [vmem:[#allocation7] sm:$0xff]
    %v80 = vld [vmem:[#allocation7 + $0x8] sm:$0xff]
    %v81 = vld [vmem:[%s0] sm:$0xf]
    %v82 = vld [vmem:[%s0 + $0x4] sm:$0xf]
    %v83 = vld [vmem:[%s0 + $0x8] sm:$0xf]
    %v84 = vld [vmem:[%s0 + $0xc] sm:$0xf]
    %v85 = vld [vmem:[%s0 + $0x10] sm:$0xf]
    %v86 = vld [vmem:[%s0 + $0x14] sm:$0xf]
    %v87 = vld [vmem:[%s0 + $0x18] sm:$0xf]
    %v88 = vld [vmem:[%s0 + $0x1c] sm:$0xf]
    %v89 = vld [vmem:[%s0 + $0x20] sm:$0xf]
    %v90 = vld [vmem:[%s0 + $0x24] sm:$0xf]
    %v91 = vld [vmem:[%s0 + $0x28] sm:$0xf]
    %v92 = vld [vmem:[%s0 + $0x2c] sm:$0xf]
    %v93 = vld [vmem:[%s0 + $0x30] sm:$0xf]
    %v94 = vld [vmem:[%s0 + $0x34] sm:$0xf]
    %v95 = vld [vmem:[%s0 + $0x38] sm:$0xf]
    %v96 = vld [vmem:[%s0 + $0x3c] sm:$0xf]
    %v97 = vld [vmem:[%s0 + $0x40] sm:$0xf]
    %v98 = vld [vmem:[%s0 + $0x44] sm:$0xf]
    %v99 = vld [vmem:[%s1] sm:$0x1]
    %v101 = vperm.slane %v99, 0
    %v105 = vunpack.c.l.b16 %v79
    %v106 = vunpack.c.h.b16 %v79
    %v107 = vunpack.c.l.b16 %v80
    %v108 = vunpack.c.h.b16 %v80
    %v109 = vpack.c.b16 %v107, %v105
    %v110 = vpack.c.b16 %v108, %v106
    %v130 = vunpack.c.l.b16 %v81
    %v131 = vunpack.c.l.b16 %v82
    %v132 = vunpack.c.l.b16 %v83
    %v133 = vunpack.c.l.b16 %v84
    %v134 = vunpack.c.l.b16 %v85
    %v135 = vunpack.c.l.b16 %v86
    %v136 = vunpack.c.l.b16 %v87
    %v137 = vunpack.c.l.b16 %v88
    %v138 = vunpack.c.l.b16 %v89
    %v139 = vunpack.c.l.b16 %v90
    %v140 = vunpack.c.l.b16 %v91
    %v141 = vunpack.c.l.b16 %v92
    %v142 = vunpack.c.l.b16 %v93
    %v143 = vunpack.c.l.b16 %v94
    %v144 = vunpack.c.l.b16 %v95
    %v145 = vunpack.c.l.b16 %v96
    %v146 = vunpack.c.l.b16 %v97
    %v147 = vunpack.c.l.b16 %v98
    %v148 = vpack.c.b16 %v131, %v130
    %v149 = vpack.c.b16 %v133, %v132
    %v150 = vpack.c.b16 %v135, %v134
    %v151 = vpack.c.b16 %v137, %v136
    %v152 = vpack.c.b16 %v139, %v138
    %v153 = vpack.c.b16 %v141, %v140
    %v154 = vpack.c.b16 %v143, %v142
    %v155 = vpack.c.b16 %v145, %v144
    %v156 = vpack.c.b16 %v147, %v146
    %vm166 = vcmask 130048
    %v168 = vsel %vm166, %v110, 0
    %170 = vmatpush.bf16.msra.mxu0 %v155
    %171 = vmatpush.bf16.msra.mxu0 %v154
    %172 = vmatpush.bf16.msra.mxu0 %v153
    %173 = vmatpush.bf16.msra.mxu0 %v152
    %174 = vmatpush.bf16.msra.mxu0 %v151
    %175 = vmatpush.bf16.msra.mxu0 %v150
    %176 = vmatpush.bf16.msra.mxu0 %v149
    %177 = vmatpush.bf16.msra.mxu0 %v148
    %178 = vmatmul.bf16.gmra.mxu0 %v109
    %v179 = vpop.f32.mrf.mxu0
    %v180 = vadd.f32 %v101, %v179
    %v181 = vpop.f32.mrf.mxu0
    %v182 = vadd.f32 %v101, %v181
    %183 = vdwg.mxu0
    %184 = vmatpush.bf16.msra.mxu0 0
    %185 = vmatpush.bf16.msra.mxu0 0
    %186 = vmatpush.bf16.msra.mxu0 0
    %187 = vmatpush.bf16.msra.mxu0 0
    %188 = vmatpush.bf16.msra.mxu0 0
    %189 = vmatpush.bf16.msra.mxu0 0
    %190 = vmatpush.bf16.msra.mxu0 0
    %191 = vmatpush.bf16.msra.mxu0 %v156
    %192 = vmatmul.bf16.gmra.mxu0 %v168
    %v193 = vpop.f32.mrf.mxu0
    %v194 = vadd.f32 %v180, %v193
    %v195 = vpop.f32.mrf.mxu0
    %v196 = vadd.f32 %v182, %v195
    %197 = vdwg.mxu0
    %v198 = vmul.f32 %v194, 0.01
    %v199 = vmul.f32 %v196, 0.01
    %v200 = vmax.f32 %v194, %v198
    %v201 = vmax.f32 %v196, %v199
    %v202 = vpack.c.bf16 %v201, %v200
    %v203 = vld [vmem:[%s2] sm:$0xf]
    %v204 = vld [vmem:[%s2 + $0x4] sm:$0xf]
    %v205 = vld [vmem:[%s2 + $0x8] sm:$0xf]
    %v206 = vld [vmem:[%s2 + $0xc] sm:$0xf]
    %v207 = vld [vmem:[%s3] sm:$0x1]
    %v209 = vperm.slane %v207, 0
    %v215 = vunpack.c.l.b16 %v203
    %v216 = vunpack.c.l.b16 %v204
    %v217 = vunpack.c.l.b16 %v205
    %v218 = vunpack.c.l.b16 %v206
    %v219 = vpack.c.b16 %v216, %v215
    %v220 = vpack.c.b16 %v218, %v217
    %vm223 = vcmask 261120
    %v225 = vsel %vm223, %v202, 0
    %227 = vmatpush.bf16.msra.mxu0 0
    %228 = vmatpush.bf16.msra.mxu0 0
    %229 = vmatpush.bf16.msra.mxu0 0
    %230 = vmatpush.bf16.msra.mxu0 0
    %231 = vmatpush.bf16.msra.mxu0 0
    %232 = vmatpush.bf16.msra.mxu0 0
    %233 = vmatpush.bf16.msra.mxu0 %v220
    %234 = vmatpush.bf16.msra.mxu0 %v219
    %235 = vmatmul.bf16.gmra.mxu0 %v225
    %v236 = vpop.f32.mrf.mxu0
    %v237 = vadd.f32 %v209, %v236
    %v238 = vpop.f32.mrf.mxu0
    %v239 = vadd.f32 %v209, %v238
    %240 = vdwg.mxu0
    %v241 = vlaneseq
    %v242 = vand.u32 %v241, 127
    %vm243 = vcmp.eq.s32.totalorder %v242, 3
    %v244 = vxor.u32 %v237, 2147483648
    %v245 = vxor.u32 %v239, 2147483648
    %v246 = vmul.f32 %v244, 1.442695
    %v247 = vpow.pop %v246
    %v248 = vmul.f32 %v245, 1.442695
    %v249 = vpow.pop %v248
    %v250 = vadd.f32 %v247, 1.0
    %v251 = vadd.f32 %v249, 1.0
    %v252 = vrcp.pop %v250
    %v253 = vmul.f32 %v250, %v252
    %v254 = vsub.f32 1.0, %v253
    %v255 = vmul.f32 %v252, %v254
    %v256 = vadd.f32 %v252, %v255
    %vm257 = vweird.f32 %v250
    %vm258 = vweird.f32 %v252
    %vm259 = vmor %vm257, %vm258
    %v260 = vsel %vm259, %v252, %v256
    %v261 = vand.u32 2147483647, %v250
    %vm262 = vcmp.eq.f32.partialorder %v261, 8.507059e+37
    %v263 = vand.u32 %v250, 2147483648
    %v264 = vor.u32 1.1754944e-38, %v263
    %v265 = vsel %vm262, %v264, %v260
    %v266 = vmul.f32 1.0, %v265
    %v267 = vrcp.pop %v251
    %v268 = vmul.f32 %v251, %v267
    %v269 = vsub.f32 1.0, %v268
    %v270 = vmul.f32 %v267, %v269
    %v271 = vadd.f32 %v267, %v270
    %vm272 = vweird.f32 %v251
    %vm273 = vweird.f32 %v267
    %vm274 = vmor %vm272, %vm273
    %v275 = vsel %vm274, %v267, %v271
    %v276 = vand.u32 2147483647, %v251
    %vm277 = vcmp.eq.f32.partialorder %v276, 8.507059e+37
    %v278 = vand.u32 %v251, 2147483648
    %v279 = vor.u32 1.1754944e-38, %v278
    %v280 = vsel %vm277, %v279, %v275
    %v281 = vmul.f32 1.0, %v280
    %v282 = vsel %vm243, 1, 0
    %vm283 = vcmp.eq.s32.totalorder %v282, 1
    %v284 = vsel %vm283, %v266, %v237
    %v285 = vsel %vm283, %v281, %v239
    %vm286 = vcmask 56320
    %287 = vst.msk [vmem:[%s6] sm:$0xff] %vm286, %v284
    %288 = vst.msk [vmem:[%s6 + $0x8] sm:$0xff] %vm286, %v285
    // Predicated region
    $region22: #{cropped_map_to_action_triplet.2} parent=1 // pred_check
      _
    $region23: #{cropped_map_to_action_triplet.2} parent=1 // pred_check_branch
      %290 = sbr.rel (0) target = $region25
    $region24: #{cropped_map_to_action_triplet.2} parent=1 // pred_region
      _
    $region25: #{cropped_map_to_action_triplet.2} parent=1 // pred_fallthru
      _
    // Predicated region
    $region26: #{cropped_map_to_action_triplet.2} parent=1 // pred_check
      _
    $region27: #{cropped_map_to_action_triplet.2} parent=1 // pred_check_branch
      %292 = sbr.rel (0) target = $region29
    $region28: #{cropped_map_to_action_triplet.2} parent=1 // pred_region
      _
    $region29: #{cropped_map_to_action_triplet.2} parent=1 // pred_fallthru
      _

</llo_original>
